<compile_context>
chip_gen: v7x
topology: tpu7x:2x2x1
jax: 0.10.0
libtpu: 0.0.40
codegen_flags: <defaults>
</compile_context>

<pallas_src>
import jax
import jax.numpy as jnp
from jax.experimental import pallas as pl
from jax.experimental.pallas import tpu as pltpu

_LANE = 128
_TARGET_BLOCK_BYTES = 4 * 1024 * 1024    # ~4 MiB x/out block per buffer
_MIN_GRID_BLOCKS = 4                     # >=2 blocks per v7x TensorCore
_VMEM_LIMIT_BYTES = 48 * 1024 * 1024     # < v7x 64 MiB physical; > v5e 16 MiB default


def _pe_add_kernel(x_ref, pe_ref, o_ref):
    # x_ref/o_ref: (bt, tn) in x.dtype; pe_ref: (1, tn).  Add in f32 so
    # large-position PE values keep precision before the downcast.
    o_ref[...] = (x_ref[...].astype(jnp.float32)
                  + pe_ref[...].astype(jnp.float32)).astype(o_ref.dtype)


def make_positional_encoding(in_dims: int, h: int, w: int,
                             dtype=jnp.float32) -> jnp.ndarray:
    """PyTorch __init__ table, precomputed once in the flat C-major layout the
    kernel consumes (pe.permute(1, 0).reshape(-1)), zero-padded to a multiple
    of 128 lanes, returned as shape (1, N_pad).

    Pass dtype=jnp.bfloat16 when x is bf16 to halve the table's HBM read."""
    hw = h * w
    half = in_dims // 2
    pos = jnp.arange(hw, dtype=jnp.float32)[:, None]              # (HW, 1)
    i = jnp.arange(half, dtype=jnp.float32)[None, :]              # (1, C//2)
    div = jnp.power(10000.0, 2.0 * i / in_dims)                   # (1, C//2)
    angles = pos / div                                            # (HW, C//2)
    pe = jnp.zeros((hw, in_dims), dtype=jnp.float32)
    pe = pe.at[:, 0:2 * half:2].set(jnp.sin(angles))              # sin at even
    pe = pe.at[:, 1:2 * half:2].set(jnp.cos(angles))              # cos at odd
    flat = pe.T.reshape(-1)                                       # (C*H*W,) C-major
    pad = (-flat.shape[0]) % _LANE
    if pad:                        # pad only the tiny constant table, never x
        flat = jnp.pad(flat, (0, pad))
    return flat.reshape(1, -1).astype(dtype)


def _choose_tiles(batch: int, n: int, itemsize: int):
    """Pick (bt, tn): block ~_TARGET_BLOCK_BYTES, legal sublane/lane shapes,
    and >=_MIN_GRID_BLOCKS parallel grid blocks when the problem allows it."""
    lane_groups = pl.cdiv(n, _LANE)
    row_bytes = lane_groups * _LANE * itemsize

    # Batch tile first (cheapest way to reach MiB-scale blocks when each row is
    # small).  Sublane rule: bt == B or a multiple of 8.
    bt_by_bytes = max(1, _TARGET_BLOCK_BYTES // row_bytes)
    if batch <= max(8, bt_by_bytes):
        bt = batch
    else:
        bt = max(8, (bt_by_bytes // 8) * 8)

    # Column tile (multiple of 128): fill (bt, tn) up to the target bytes.
    groups = max(1, min(lane_groups,
                        _TARGET_BLOCK_BYTES // (bt * _LANE * itemsize)))

    # Ensure >=_MIN_GRID_BLOCKS blocks along the parallel grid so both v7x TCs
    # get work (cheap on single-TC v5e/v6e: these shapes are tiny anyway).
    def _total(g):
        return pl.cdiv(lane_groups, g) * pl.cdiv(batch, bt)
    while _total(groups) < _MIN_GRID_BLOCKS and groups > 1:
        groups = pl.cdiv(groups, 2)

    return bt, groups * _LANE


def _positional_encoding_forward(x: jnp.ndarray, pe_padded: jnp.ndarray) -> jnp.ndarray:
    """x: (B, C, H, W); pe_padded: (1, round_up(C*H*W, 128)) from
    make_positional_encoding."""
    batch, c, h, w = x.shape
    n = c * h * w
    x2 = x.reshape(batch, n)                          # bitcast view, no copy

    bt, tn = _choose_tiles(batch, n, jnp.dtype(x.dtype).itemsize)
    grid = (pl.cdiv(n, tn), pl.cdiv(batch, bt))       # batch innermost -> pe revisit

    out = pl.pallas_call(
        _pe_add_kernel,
        out_shape=jax.ShapeDtypeStruct((batch, n), x.dtype),
        grid_spec=pltpu.PrefetchScalarGridSpec(
            num_scalar_prefetch=0,
            grid=grid,
            in_specs=[
                pl.BlockSpec((bt, tn), lambda nb, bb: (bb, nb)),
                # pe index ignores the inner batch axis -> stays VMEM-resident.
                pl.BlockSpec((1, tn), lambda nb, bb: (0, nb)),
            ],
            out_specs=pl.BlockSpec((bt, tn), lambda nb, bb: (bb, nb)),
        ),
        input_output_aliases={0: 0},   # in-place add; effective because x is donated
        compiler_params=pltpu.CompilerParams(
            dimension_semantics=("parallel", "parallel"),
            vmem_limit_bytes=_VMEM_LIMIT_BYTES,
        ),
    )(x2, pe_padded)

    return out.reshape(batch, c, h, w)


# Donation makes the pallas-level alias real: without it XLA inserts a
# defensive copy and the (B, N) output write comes back.
positional_encoding_forward = jax.jit(_positional_encoding_forward, donate_argnums=0)


if __name__ == "__main__":
    # Small shapes consistent with the module: in_dims == C, spatial h, w.
    B, C, H, W = 2, 4, 16, 16
    N = C * H * W

    key = jax.random.PRNGKey(0)
    x = jax.random.normal(key, (B, C, H, W), dtype=jnp.float32)
    x_dtype = x.dtype

    pe_padded = make_positional_encoding(C, H, W)   # (1, N_pad) f32, built once

    # Reference (mirrors the PyTorch forward).  Materialize it BEFORE the
    # donating kernel call consumes x's buffer.
    ref = x + pe_padded[0, :N].reshape(1, C, H, W)
    ref = jax.block_until_ready(ref)

    out = positional_encoding_forward(x, pe_padded)
    out = jax.block_until_ready(out)

    assert out.shape == (B, C, H, W)
    assert out.dtype == x_dtype
    assert jnp.allclose(out, ref, atol=1e-6, rtol=1e-6)

    print("KERNEL_OK")
</pallas_src>

<mosaic_0001>
module attributes {stable_mosaic.version = 11 : i64} {
  func.func @_pe_add_kernel(%arg0: i32, %arg1: i32, %arg2: memref<2x256xf32, #tpu.memory_space<vmem>>, %arg3: memref<1x256xf32, #tpu.memory_space<vmem>>, %arg4: memref<2x256xf32, #tpu.memory_space<vmem>>) attributes {dimension_semantics = [#tpu.dimension_semantics<parallel>, #tpu.dimension_semantics<parallel>], iteration_bounds = array<i64: 4, 1>, scalar_prefetch = 0 : i64, scratch_operands = 0 : i64, tpu.core_type = #tpu.core_type<tc>, window_params = [{transform_indices = @transform_0, window_bounds = array<i64: 2, 256>}, {transform_indices = @transform_1, window_bounds = array<i64: 1, 256>}, {transform_indices = @transform_2, window_bounds = array<i64: 2, 256>}]} {
    %c0 = arith.constant 0 : index
    %c0_0 = arith.constant 0 : index
    %0 = vector.load %arg2[%c0, %c0_0] : memref<2x256xf32, #tpu.memory_space<vmem>>, vector<2x256xf32>
    %c0_1 = arith.constant 0 : index
    %c0_2 = arith.constant 0 : index
    %1 = vector.load %arg3[%c0_1, %c0_2] : memref<1x256xf32, #tpu.memory_space<vmem>>, vector<1x256xf32>
    %2 = vector.broadcast %1 : vector<1x256xf32> to vector<2x256xf32>
    %3 = arith.addf %0, %2 : vector<2x256xf32>
    %c0_3 = arith.constant 0 : index
    %c0_4 = arith.constant 0 : index
    %4 = vector.load %arg4[%c0_3, %c0_4] : memref<2x256xf32, #tpu.memory_space<vmem>>, vector<2x256xf32>
    tpu.vector_store %arg4[%c0_3, %c0_4], %3 {strides = array<i32>} : memref<2x256xf32, #tpu.memory_space<vmem>>, vector<2x256xf32>,
    return
  }
  func.func @transform_0(%arg0: i32, %arg1: i32) -> (i32, i32) {
    %c0_i32 = arith.constant 0 : i32
    return %arg1, %arg0 : i32, i32
  }
  func.func @transform_1(%arg0: i32, %arg1: i32) -> (i32, i32) {
    %c0_i32 = arith.constant 0 : i32
    %c0_i32_0 = arith.constant 0 : i32
    return %c0_i32, %arg0 : i32, i32
  }
  func.func @transform_2(%arg0: i32, %arg1: i32) -> (i32, i32) {
    %c0_i32 = arith.constant 0 : i32
    return %arg1, %arg0 : i32, i32
  }
}

</mosaic_0001>

<llo_original>
// kernel: _positional_encoding_forward.1
$region0: #{_positional_encoding_forward.1}
  #allocation0 [shape = 'u32[]', space=smem, size = 0x4, offset = 0x4, fixed_abs, tag = 'smem constant byte address 0x4 - core index']
  #allocation1 [shape = 'u32[144,128]{1,0:T(1,128)}', space=vmem, size = 0x12000, scoped, tag = 'internal scratch']
  %s0 = inlined_call_operand.vmem [shape: f32[2,1024], index: 0, kind: input, shape index: {}, may-alias: {0,2}]
  %s1 = inlined_call_operand.vmem [shape: f32[1,1024], index: 1, kind: input, shape index: {}]
  %s2 = inlined_call_operand.vmem [shape: f32[2,1024], index: 2, kind: output, shape index: {}, may-alias: {0,2}]
  %s3 = sld [smem:[#allocation0]]
  $region41: #{_positional_encoding_forward.1} parent=0
    _
  %s5 = ssub.s32 1, %s3
  %s6 = scalar_select 0, %s5, %s3
  loop: start=0, step=1, limit=6
  $region2: #{_positional_encoding_forward.1} parent=0 // loop_pre_header
    _
  $region3: #{_positional_encoding_forward.1} parent=0 // loop_header
    %s8 = sphi 0, %s12
    %p9 = scmp.ge.s32.totalorder %s8, 6
    %s15 = sphi 0, %s27
    %s16 = sphi 0, %s23
    %s17 = sphi 0, %s15
    %s18 = sphi 0, %s16
    %s19 = sphi 0, %s17
    %s20 = sphi 0, %s18
    %s32 = sphi 0, %s34
    %s35 = sphi 0, %s32
    %s36 = sphi 0, %s35
    %s52 = sphi 0, %s36
    %s58 = sphi 0, %s60
    %s61 = sphi 0, %s58
    %s62 = sphi 0, %s61
    %s78 = sphi 0, %s62
    %s86 = sphi 0, %s88
    %s89 = sphi 0, %s86
    %s90 = sphi 0, %s89
    %s106 = sphi 0, %s90
  $region4: #{_positional_encoding_forward.1} parent=0 // loop_header_branch
    %11 = sbr.rel (%p9) target = $region8
  $region5: #{_positional_encoding_forward.1} parent=0 // loop_body
    %s13 = ssub.s32 %s8, 1
    %s14 = ssub.s32 %s8, 2
    %s21 = sadd.s32 1, %s16
    %p22 = scmp.ge.s32.totalorder %s21, 1
    %s23 = scalar_select %p22, 0, %s21
    %s24 = sadd.s32 1, %s15
    %s25 = scalar_select %p22, %s24, %s15
    %p26 = scmp.ge.s32.totalorder %s25, 4
    %s27 = scalar_select %p26, 0, %s25
    %s28 = ssub.s32 %s16, %s23
    %s29 = ssub.s32 %s15, %s27
    %s30 = sor.u32 %s28, %s29
    %p31 = scmp.eq.s32.totalorder %s30, 0
    %s33 = sadd.s32 %s32, 1
    %s34 = scalar_select %p31, %s32, %s33
    %p37 = pneg %p31
    %p38 = scmp.eq.s32.totalorder %s8, 3
    %p39 = por %p37, %p38
    %p40 = scmp.ne.s32.totalorder %s32, %s35
    %p41 = scmp.eq.s32.totalorder %s8, 0
    %p42 = por %p40, %p41
    %p43 = scmp.ne.s32.totalorder %s32, %s35
    %p44 = scmp.eq.s32.totalorder %s13, 3
    %p45 = por %p43, %p44
    %p46 = scmp.ne.s32.totalorder %s35, %s36
    %p47 = scmp.eq.s32.totalorder %s13, 0
    %p48 = por %p46, %p47
    %p49 = scmp.ne.s32.totalorder %s35, %s36
    %p50 = scmp.eq.s32.totalorder %s14, 3
    %p51 = por %p49, %p50
    %p53 = scmp.ne.s32.totalorder %s36, %s52
    %p54 = scmp.eq.s32.totalorder %s14, 0
    %p55 = por %p53, %p54
    %s56 = ssub.s32 %s15, %s27
    %p57 = scmp.eq.s32.totalorder %s56, 0
    %s59 = sadd.s32 %s58, 1
    %s60 = scalar_select %p57, %s58, %s59
    %p63 = pneg %p57
    %p64 = scmp.eq.s32.totalorder %s8, 3
    %p65 = por %p63, %p64
    %p66 = scmp.ne.s32.totalorder %s58, %s61
    %p67 = scmp.eq.s32.totalorder %s8, 0
    %p68 = por %p66, %p67
    %p69 = scmp.ne.s32.totalorder %s58, %s61
    %p70 = scmp.eq.s32.totalorder %s13, 3
    %p71 = por %p69, %p70
    %p72 = scmp.ne.s32.totalorder %s61, %s62
    %p73 = scmp.eq.s32.totalorder %s13, 0
    %p74 = por %p72, %p73
    %p75 = scmp.ne.s32.totalorder %s61, %s62
    %p76 = scmp.eq.s32.totalorder %s14, 3
    %p77 = por %p75, %p76
    %p79 = scmp.ne.s32.totalorder %s62, %s78
    %p80 = scmp.eq.s32.totalorder %s14, 0
    %p81 = por %p79, %p80
    %s82 = ssub.s32 %s16, %s23
    %s83 = ssub.s32 %s15, %s27
    %s84 = sor.u32 %s82, %s83
    %p85 = scmp.eq.s32.totalorder %s84, 0
    %s87 = sadd.s32 %s86, 1
    %s88 = scalar_select %p85, %s86, %s87
    %p91 = pneg %p85
    %p92 = scmp.eq.s32.totalorder %s8, 3
    %p93 = por %p91, %p92
    %p94 = scmp.ne.s32.totalorder %s86, %s89
    %p95 = scmp.eq.s32.totalorder %s8, 0
    %p96 = por %p94, %p95
    %p97 = scmp.ne.s32.totalorder %s86, %s89
    %p98 = scmp.eq.s32.totalorder %s13, 3
    %p99 = por %p97, %p98
    %p100 = scmp.ne.s32.totalorder %s89, %s90
    %p101 = scmp.eq.s32.totalorder %s13, 0
    %p102 = por %p100, %p101
    %p103 = scmp.ne.s32.totalorder %s89, %s90
    %p104 = scmp.eq.s32.totalorder %s14, 3
    %p105 = por %p103, %p104
    %p107 = scmp.ne.s32.totalorder %s90, %s106
    %p108 = scmp.eq.s32.totalorder %s14, 0
    %p109 = por %p107, %p108
    %p110 = scmp.le.s32.totalorder 1, %s8
    %p111 = scmp.lt.s32.totalorder %s8, 5
    %p112 = pnand %p110, %p111
    %p113 = pneg %p112
    // Predicated region
    $region9: #{_positional_encoding_forward.1} parent=5 // pred_check
      _
    $region10: #{_positional_encoding_forward.1} parent=5 // pred_check_branch
      %115 = sbr.rel (%p112) target = $region12
    $region11: #{_positional_encoding_forward.1} parent=5 // pred_region
      %s116 = ssub.s32 %s8, 1
    $region12: #{_positional_encoding_forward.1} parent=5 // pred_fallthru
      _
    %p117 = scmp.lt.s32.totalorder %s8, 4
    // Predicated region
    $region13: #{_positional_encoding_forward.1} parent=5 // pred_check
      %p118 = pneg %p117
    $region14: #{_positional_encoding_forward.1} parent=5 // pred_check_branch
      %120 = sbr.rel (%p118) target = $region16
    $region15: #{_positional_encoding_forward.1} parent=5 // pred_region
      // Predicated region
      $region17: #{_positional_encoding_forward.1} parent=15 // pred_check
        %p121 = pneg %p42
      $region18: #{_positional_encoding_forward.1} parent=15 // pred_check_branch
        %123 = sbr.rel (%p121) target = $region20
      $region19: #{_positional_encoding_forward.1} parent=15 // pred_region
        %s124 = smul.u32 2, %s15
        %p125 = scmp.lt.s32.totalorder %s16, 0
        %s126 = scalar_select %p125, %s16, 0
        %p127 = scmp.lt.s32.totalorder %s124, 7
        %s128 = scalar_select %p127, %s124, 7
        %s129 = smul.addr %s126, 8
        %s130 = sadd.s32 %s128, %s129
        %s131 = smul.addr %s130, 2
        %s132 = scalar_lea.vmem %s0, %s131
        %s133 = smul.u32 2, %s15
      $region20: #{_positional_encoding_forward.1} parent=15 // pred_fallthru
        _
      // Predicated region
      $region21: #{_positional_encoding_forward.1} parent=15 // pred_check
        %p134 = pneg %p68
      $region22: #{_positional_encoding_forward.1} parent=15 // pred_check_branch
        %136 = sbr.rel (%p134) target = $region24
      $region23: #{_positional_encoding_forward.1} parent=15 // pred_region
        %s137 = smul.u32 2, %s15
        %p138 = scmp.lt.s32.totalorder %s137, 7
        %s139 = scalar_select %p138, %s137, 7
        %s140 = scalar_lea.vmem %s1, %s139
        %s141 = smul.u32 2, %s15
      $region24: #{_positional_encoding_forward.1} parent=15 // pred_fallthru
        _
    $region16: #{_positional_encoding_forward.1} parent=5 // pred_fallthru
      _
    %p142 = scmp.le.s32.totalorder 1, %s8
    %p143 = scmp.lt.s32.totalorder %s8, 5
    %p144 = pnand %p142, %p143
    %p145 = pneg %p144
    // Predicated region
    $region25: #{_positional_encoding_forward.1} parent=5 // pred_check
      _
    $region26: #{_positional_encoding_forward.1} parent=5 // pred_check_branch
      %147 = sbr.rel (%p144) target = $region28
    $region27: #{_positional_encoding_forward.1} parent=5 // pred_region
      %s148 = ssub.s32 %s8, 1
      %s149 = smul.u32 2, %s17
      %p150 = scmp.lt.s32.totalorder %s18, 0
      %s151 = scalar_select %p150, %s18, 0
      %p152 = scmp.lt.s32.totalorder %s149, 7
      %s153 = scalar_select %p152, %s149, 7
      %s154 = smul.addr %s151, 8
      %s155 = sadd.s32 %s153, %s154
      %s156 = smul.addr %s155, 2
      %s157 = scalar_lea.vmem %s0, %s156
      %p158 = pneg %p48
      %p159 = pneg %p45
      %s160 = smul.u32 2, %s17
      %p161 = scmp.lt.s32.totalorder %s160, 7
      %s162 = scalar_select %p161, %s160, 7
      %s163 = scalar_lea.vmem %s1, %s162
      %p164 = pneg %p74
      %p165 = pneg %p71
      %p166 = pneg %p102
      %p167 = pneg %p99
      %s168 = smul.u32 2, %s17
      %p169 = scmp.lt.s32.totalorder %s18, 0
      %s170 = scalar_select %p169, %s18, 0
      %p171 = scmp.lt.s32.totalorder %s168, 7
      %s172 = scalar_select %p171, %s168, 7
      %s173 = smul.addr %s170, 8
      %s174 = sadd.s32 %s172, %s173
      %s175 = smul.addr %s174, 2
      %s176 = scalar_lea.vmem %s2, %s175
      %s177 = smul.u32 2, %s17
      %p178 = scmp.lt.s32.totalorder %s18, 0
      %s179 = scalar_select %p178, %s18, 0
      %p180 = scmp.lt.s32.totalorder %s177, 7
      %s181 = scalar_select %p180, %s177, 7
      %s182 = smul.addr %s179, 8
      %s183 = sadd.s32 %s181, %s182
      %s184 = smul.addr %s183, 2
      %s185 = scalar_lea.vmem %s0, %s184
      %s186 = smul.u32 2, %s17
      %s187 = smul.u32 2, %s17
      %p188 = scmp.lt.s32.totalorder %s187, 7
      %s189 = scalar_select %p188, %s187, 7
      %s190 = scalar_lea.vmem %s1, %s189
      %s191 = smul.u32 2, %s17
      %s192 = smul.u32 2, %s17
      %p193 = scmp.lt.s32.totalorder %s18, 0
      %s194 = scalar_select %p193, %s18, 0
      %p195 = scmp.lt.s32.totalorder %s192, 7
      %s196 = scalar_select %p195, %s192, 7
      %s197 = smul.addr %s194, 8
      %s198 = sadd.s32 %s196, %s197
      %s199 = smul.addr %s198, 2
      %s200 = scalar_lea.vmem %s2, %s199
      %s201 = smul.u32 2, %s17
      %v202 = vld [vmem:[%s185] sm:$0xf]
      %v203 = vld [vmem:[%s190] sm:$0x3]
      %v205 = vlaneseq
      %v206 = vshrl.u32 %v205, 7
      %v207 = vsub.s32 0, %v206
      %v208 = vrot.slane %v203, %v207
      %v209 = vlaneseq
      %v210 = vshrl.u32 %v209, 7
      %v211 = vsub.s32 1, %v210
      %v212 = vrot.slane %v203, %v211
      %v213 = vcombine.low %v208, %v212
      %v215 = vunpack.c.l.s4 1983009808
      %v216 = vunpack.c.0.s8 %v215
      %v217 = vlaneseq
      %v218 = vshrl.u32 %v217, 7
      %v219 = vsub.s32 %v216, %v218
      %v220 = vrot.slane %v213, %v219
      %v222 = vadd.f32 %v202, %v220
      %223 = vst [vmem:[%s200] sm:$0xf] %v222
      %s224 = smul.u32 2, %s17
      %p225 = scmp.lt.s32.totalorder %s18, 0
      %s226 = scalar_select %p225, %s18, 0
      %p227 = scmp.lt.s32.totalorder %s224, 7
      %s228 = scalar_select %p227, %s224, 7
      %s229 = smul.addr %s226, 8
      %s230 = sadd.s32 %s228, %s229
      %s231 = smul.addr %s230, 2
      %s232 = scalar_lea.vmem %s2, %s231
      // Predicated region
      $region29: #{_positional_encoding_forward.1} parent=27 // pred_check
        %p233 = pneg %p99
      $region30: #{_positional_encoding_forward.1} parent=27 // pred_check_branch
        %235 = sbr.rel (%p233) target = $region32
      $region31: #{_positional_encoding_forward.1} parent=27 // pred_region
        %s236 = smul.u32 2, %s17
      $region32: #{_positional_encoding_forward.1} parent=27 // pred_fallthru
        _
    $region28: #{_positional_encoding_forward.1} parent=5 // pred_fallthru
      _
    %p237 = scmp.le.s32.totalorder 2, %s8
    // Predicated region
    $region33: #{_positional_encoding_forward.1} parent=5 // pred_check
      %p238 = pneg %p237
    $region34: #{_positional_encoding_forward.1} parent=5 // pred_check_branch
      %240 = sbr.rel (%p238) target = $region36
    $region35: #{_positional_encoding_forward.1} parent=5 // pred_region
      %s241 = ssub.s32 %s8, 2
      // Predicated region
      $region37: #{_positional_encoding_forward.1} parent=35 // pred_check
        %p242 = pneg %p105
      $region38: #{_positional_encoding_forward.1} parent=35 // pred_check_branch
        %244 = sbr.rel (%p242) target = $region40
      $region39: #{_positional_encoding_forward.1} parent=35 // pred_region
        %s245 = smul.u32 2, %s19
        %p246 = scmp.lt.s32.totalorder %s20, 0
        %s247 = scalar_select %p246, %s20, 0
        %p248 = scmp.lt.s32.totalorder %s245, 7
        %s249 = scalar_select %p248, %s245, 7
        %s250 = smul.addr %s247, 8
        %s251 = sadd.s32 %s249, %s250
        %s252 = smul.addr %s251, 2
        %s253 = scalar_lea.vmem %s2, %s252
      $region40: #{_positional_encoding_forward.1} parent=35 // pred_fallthru
        _
    $region36: #{_positional_encoding_forward.1} parent=5 // pred_fallthru
      _
  $region6: #{_positional_encoding_forward.1} parent=0 // loop_footer
    %s12 = sadd.s32 1, %s8
  $region7: #{_positional_encoding_forward.1} parent=0 // loop_footer_branch
    %7 = sbr.rel target = $region3
  $region8: #{_positional_encoding_forward.1} parent=0 // loop_exit
    _

</llo_original>
